<compile_context>
chip_gen: v6e
topology: v6e:2x2x1
jax: 0.10.0
libtpu: 0.0.40
codegen_flags: <defaults>
</compile_context>

<pallas_src>
import functools

import jax
import jax.numpy as jnp
from jax import lax
from jax.experimental import pallas as pl
from jax.experimental.pallas import tpu as pltpu

LANE = 128
SUBLANE = 8
DEFAULT_TILE_ROWS = 2048     # 2048 * 128 * 4 B = 1 MiB per input block
NUM_CORES = 2                # leading "parallel" grid axis (v7x dual TC)


def _round_up(v, m):
    return ((v + m - 1) // m) * m


# ---------------------------------------------------------------------------
# Fused kernel:
#   grid = (NUM_CORES, tiles_per_core); axis 0 parallel, axis 1 arbitrary.
#   Each (core, step) processes one (tile_rows, 128) tile of inputs/targets,
#   reduces it to one (8,128) vreg and accumulates.  The last step of each
#   core writes its scaled partial; core 0 additionally DMAs the (HBM-resident)
#   parameter slab into a scratch and adds lambda1 * L1.
# ---------------------------------------------------------------------------
def _fused_focal_l1_kernel(n_ref, scal_ref, x_ref, t_ref, p_hbm, o_ref,
                           acc_ref, p_vmem, *, gamma, logits, binary_targets,
                           tile_rows, tiles_per_core):
    c = pl.program_id(0)               # parallel ("core") axis
    i = pl.program_id(1)               # sequential reduction axis

    @pl.when(i == 0)
    def _init():
        acc_ref[...] = jnp.zeros_like(acc_ref)

    x = x_ref[...]
    t = t_ref[...]

    if logits:
        # binary_cross_entropy_with_logits, reduction='none' (stable form).
        e = jnp.exp(-jnp.abs(x))
        bce = jnp.maximum(x, 0.0) - x * t + jnp.log1p(e)
    else:
        # binary_cross_entropy, reduction='none' (torch clamps logs at -100).
        log_x = jnp.maximum(jnp.log(x), -100.0)
        log_1mx = jnp.maximum(jnp.log(1.0 - x), -100.0)
        bce = -(t * log_x + (1.0 - t) * log_1mx)

    # (1 - pt)**gamma, specialized at trace time (gamma is a Python float).
    if gamma == 0.0:
        f_loss = bce                                     # no EUP work at all
    else:
        if logits and binary_targets:
            # [opt7] reuse e = exp(-|x|):  1 - pt = sigmoid((1-2t) * x).
            # (approx=True would shave a few more cycles at ~1e-4 accuracy.)
            r = pl.reciprocal(1.0 + e, approx=False)
            one_minus_pt = jnp.where((1.0 - 2.0 * t) * x >= 0.0, r, e * r)
        else:
            one_minus_pt = 1.0 - jnp.exp(-bce)
        if float(gamma).is_integer() and 0 < gamma <= 4:
            w = one_minus_pt
            for _ in range(int(gamma) - 1):
                w = w * one_minus_pt
        else:
            # Fractional gamma fallback; guard pow(0, gamma) lowering.
            w = jnp.where(one_minus_pt > 0.0,
                          jnp.exp(gamma * jnp.log(jnp.maximum(one_minus_pt,
                                                              1e-38))),
                          0.0)
        f_loss = w * bce

    # [opt2/opt4] Mask lane padding, ragged/stale rows of the boundary tile and
    # phantom (clamped) tiles: global element index >= n contributes 0.
    tile_lin = c * tiles_per_core + i            # UNclamped linear tile index
    base = tile_lin * (tile_rows * LANE)
    rows = lax.broadcasted_iota(jnp.int32, f_loss.shape, 0)
    lanes = lax.broadcasted_iota(jnp.int32, f_loss.shape, 1)
    idx = base + rows * LANE + lanes
    f_loss = jnp.where(idx < n_ref[0], f_loss, 0.0)

    # [opt3] Reduce the tile to a single (8,128) vreg with a tree of
    # sublane-aligned static slices + element-wise (VPU) adds, then accumulate.
    parts = [f_loss[k * SUBLANE:(k + 1) * SUBLANE, :]
             for k in range(tile_rows // SUBLANE)]
    while len(parts) > 1:
        nxt = [a + b for a, b in zip(parts[0::2], parts[1::2])]
        if len(parts) % 2:
            nxt.append(parts[-1])
        parts = nxt
    acc_ref[...] += parts[0]

    @pl.when(i == pl.num_programs(1) - 1)
    def _finalize():
        inv_n = scal_ref[0]
        alpha = scal_ref[1]
        partial = alpha * inv_n * jnp.sum(acc_ref[...])   # XLU reduce, once
        o_ref[...] = jnp.broadcast_to(partial, (SUBLANE, LANE))

        @pl.when(c == 0)
        def _l1():
            # [opt8] params live in HBM; copied into VMEM exactly once.
            lam = scal_ref[2]
            pltpu.sync_copy(p_hbm, p_vmem)
            l1 = jnp.sum(jnp.abs(p_vmem[...]))            # zero pad adds 0
            o_ref[...] = o_ref[...] + lam * l1


# ---------------------------------------------------------------------------
# Wrapper == FocalLoss.forward(model, inputs, targets)
# ---------------------------------------------------------------------------
def focal_loss(model_params, inputs, targets, *, lambda1,
               alpha=1.0, gamma=0.0, logits=False,
               assume_binary_targets=True, tile_rows=DEFAULT_TILE_ROWS):
    x_flat = jnp.reshape(inputs, (-1,)).astype(jnp.float32)
    t_flat = jnp.reshape(targets, (-1,)).astype(jnp.float32)
    n = x_flat.shape[0]

    rows0 = pl.cdiv(n, LANE)
    if rows0 >= tile_rows:
        tr = tile_rows
        rows_arr = rows0                       # ragged last tile handled in-kernel
    else:
        # Tiny input: single tile; keep block rows <= array rows.
        tr = _round_up(max(rows0, SUBLANE), SUBLANE)
        rows_arr = tr

    pad = rows_arr * LANE - n
    if pad:
        # [opt2] copy only for lane-misaligned or tiny inputs; pad value is
        # irrelevant because padded elements are masked in-kernel (idx < n).
        x2d = jnp.pad(x_flat, (0, pad)).reshape(rows_arr, LANE)
        t2d = jnp.pad(t_flat, (0, pad)).reshape(rows_arr, LANE)
    else:
        x2d = x_flat.reshape(rows_arr, LANE)   # metadata-only, zero copy
        t2d = t_flat.reshape(rows_arr, LANE)

    num_tiles = pl.cdiv(rows_arr, tr)
    tiles_per_core = pl.cdiv(num_tiles, NUM_CORES)

    # Flattened, zero-padded model parameters (zero pad adds 0 to ||.||_1).
    p_flat = jnp.concatenate(
        [jnp.reshape(p, (-1,)).astype(jnp.float32) for p in model_params])
    n_p = p_flat.shape[0]
    p_rows = max(SUBLANE, _round_up(pl.cdiv(n_p, LANE), SUBLANE))
    p2d = jnp.pad(p_flat, (0, p_rows * LANE - n_p)).reshape(p_rows, LANE)

    # Runtime scalars via SMEM (no recompile on new n / alpha / lambda1).
    n_smem = jnp.array([n], jnp.int32)
    scal_smem = jnp.array([1.0 / n, float(alpha), float(lambda1)], jnp.float32)

    kernel = functools.partial(
        _fused_focal_l1_kernel, gamma=float(gamma), logits=bool(logits),
        binary_targets=bool(assume_binary_targets),
        tile_rows=tr, tiles_per_core=tiles_per_core)

    def xt_map(c, i):
        # Clamp phantom tiles of the second half onto the last real tile;
        # the in-kernel idx<n mask zeroes their contribution.
        return (jnp.minimum(c * tiles_per_core + i, num_tiles - 1), 0)

    # [opt1/5/6] VMEM budget: 2 inputs x 2 pipeline buffers x tile + scratch;
    # only raise the scoped limit when a big tile actually needs it.
    vmem_need = 2 * 2 * tr * LANE * 4 + p_rows * LANE * 4 + (1 << 20)
    vmem_limit = int(1.25 * vmem_need) if vmem_need > 14 * (1 << 20) else None

    out = pl.pallas_call(
        kernel,
        out_shape=jax.ShapeDtypeStruct((NUM_CORES * SUBLANE, LANE),
                                       jnp.float32),
        grid=(NUM_CORES, tiles_per_core),
        in_specs=[
            pl.BlockSpec(memory_space=pltpu.MemorySpace.SMEM),   # n
            pl.BlockSpec(memory_space=pltpu.MemorySpace.SMEM),   # 1/n, alpha, lambda1
            pl.BlockSpec((tr, LANE), xt_map),                    # inputs tile
            pl.BlockSpec((tr, LANE), xt_map),                    # targets tile
            pl.BlockSpec(memory_space=pl.ANY),                   # params stay in HBM
        ],
        out_specs=pl.BlockSpec((SUBLANE, LANE), lambda c, i: (c, 0)),
        scratch_shapes=[
            pltpu.VMEM((SUBLANE, LANE), jnp.float32),            # (8,128) accumulator
            pltpu.VMEM((p_rows, LANE), jnp.float32),             # params landing buffer
        ],
        compiler_params=pltpu.CompilerParams(
            dimension_semantics=("parallel", "arbitrary"),
            vmem_limit_bytes=vmem_limit),
    )(n_smem, scal_smem, x2d, t2d, p2d)

    # Per-core scaled partials live at rows c*8; core 0's row already adds λ·L1.
    return out[0, 0] + out[SUBLANE, 0]


# ---------------------------------------------------------------------------
# Pure-JAX reference (mirrors the PyTorch module exactly).
# ---------------------------------------------------------------------------
def _focal_loss_ref(model_params, inputs, targets, *, lambda1,
                    alpha=1.0, gamma=0.0, logits=False):
    x = inputs.astype(jnp.float32)
    t = targets.astype(jnp.float32)
    if logits:
        bce = jnp.maximum(x, 0.0) - x * t + jnp.log1p(jnp.exp(-jnp.abs(x)))
    else:
        bce = -(t * jnp.maximum(jnp.log(x), -100.0)
                + (1.0 - t) * jnp.maximum(jnp.log(1.0 - x), -100.0))
    pt = jnp.exp(-bce)
    f = alpha * (1.0 - pt) ** gamma * bce
    l1 = sum(jnp.sum(jnp.abs(p)) for p in model_params)
    return jnp.mean(f) + jnp.float32(lambda1) * l1


if __name__ == "__main__":
    key = jax.random.PRNGKey(0)
    k_in, k_tg, kw1, kb1, kw2, kb2, k_big, k_tgb = jax.random.split(key, 8)

    # Small synthetic "model" parameters (MLP head 32 -> 16 -> 1).
    model_params = [
        0.1 * jax.random.normal(kw1, (32, 16), jnp.float32),
        0.1 * jax.random.normal(kb1, (16,), jnp.float32),
        0.1 * jax.random.normal(kw2, (16, 1), jnp.float32),
        0.1 * jax.random.normal(kb2, (1,), jnp.float32),
    ]
    lambda1 = 1e-3

    # Case 1: FocalLoss defaults (alpha=1, gamma=0, logits=False), batch=16.
    batch = 16
    raw = jax.random.normal(k_in, (batch, 1), jnp.float32)
    probs = jax.nn.sigmoid(raw)
    targets = (jax.random.uniform(k_tg, (batch, 1)) > 0.5).astype(jnp.float32)

    loss1 = jax.block_until_ready(
        focal_loss(model_params, probs, targets, lambda1=lambda1,
                   alpha=1.0, gamma=0.0, logits=False))
    ref1 = _focal_loss_ref(model_params, probs, targets, lambda1=lambda1,
                           alpha=1.0, gamma=0.0, logits=False)
    assert jnp.allclose(loss1, ref1, rtol=1e-5, atol=1e-5), (loss1, ref1)

    # Case 2: logits=True, alpha=0.25, gamma=2 (integer-gamma + shared-exp path).
    loss2 = jax.block_until_ready(
        focal_loss(model_params, raw, targets, lambda1=lambda1,
                   alpha=0.25, gamma=2.0, logits=True))
    ref2 = _focal_loss_ref(model_params, raw, targets, lambda1=lambda1,
                           alpha=0.25, gamma=2.0, logits=True)
    assert jnp.allclose(loss2, ref2, rtol=1e-5, atol=1e-5), (loss2, ref2)

    # Case 3: lane-aligned larger batch -> zero-copy reshape, multi-tile grid,
    # ragged last tile, both "cores" busy, fractional-gamma path.
    batch3 = 200 * LANE                                   # 25600 elements
    raw3 = jax.random.normal(k_big, (batch3, 1), jnp.float32)
    targets3 = (jax.random.uniform(k_tgb, (batch3, 1)) > 0.5).astype(jnp.float32)
    loss3 = jax.block_until_ready(
        focal_loss(model_params, raw3, targets3, lambda1=lambda1,
                   alpha=0.5, gamma=1.5, logits=True, tile_rows=64))
    ref3 = _focal_loss_ref(model_params, raw3, targets3, lambda1=lambda1,
                           alpha=0.5, gamma=1.5, logits=True)
    assert jnp.allclose(loss3, ref3, rtol=1e-4, atol=1e-5), (loss3, ref3)

    print("KERNEL_OK")
</pallas_src>

<mosaic_0001>
module attributes {stable_mosaic.version = 11 : i64} {
  func.func @_fused_focal_l1_kernel(%arg0: i32, %arg1: i32, %arg2: memref<1xi32, #tpu.memory_space<smem>>, %arg3: memref<3xf32, #tpu.memory_space<smem>>, %arg4: memref<8x128xf32, #tpu.memory_space<vmem>>, %arg5: memref<8x128xf32, #tpu.memory_space<vmem>>, %arg6: memref<8x128xf32, #tpu.memory_space<any>>, %arg7: memref<8x128xf32, #tpu.memory_space<vmem>>, %arg8: memref<8x128xf32, #tpu.memory_space<vmem>>, %arg9: memref<8x128xf32, #tpu.memory_space<vmem>>) attributes {dimension_semantics = [#tpu.dimension_semantics<parallel>, #tpu.dimension_semantics<arbitrary>], iteration_bounds = array<i64: 2, 1>, scalar_prefetch = 0 : i64, scratch_operands = 2 : i64, tpu.core_type = #tpu.core_type<tc>, window_params = [{transform_indices = @transform_0, window_bounds = array<i64: 1>}, {transform_indices = @transform_1, window_bounds = array<i64: 3>}, {transform_indices = @transform_2, window_bounds = array<i64: 8, 128>}, {transform_indices = @transform_3, window_bounds = array<i64: 8, 128>}, {}, {transform_indices = @transform_5, window_bounds = array<i64: 8, 128>}]} {
    %c0_i32 = arith.constant 0 : i32
    %0 = arith.cmpi eq, %arg1, %c0_i32 : i32
    %1 = arith.extui %0 : i1 to i32
    %c0_i32_0 = arith.constant 0 : i32
    %2 = arith.cmpi ne, %1, %c0_i32_0 : i32
    scf.if %2 {
      %cst_16 = arith.constant 0.000000e+00 : f32
      %41 = vector.broadcast %cst_16 : f32 to vector<8x128xf32>
      %c0_17 = arith.constant 0 : index
      %c0_18 = arith.constant 0 : index
      %42 = vector.load %arg8[%c0_17, %c0_18] : memref<8x128xf32, #tpu.memory_space<vmem>>, vector<8x128xf32>
      tpu.vector_store %arg8[%c0_17, %c0_18], %41 {strides = array<i32>} : memref<8x128xf32, #tpu.memory_space<vmem>>, vector<8x128xf32>,
    } else {
    }
    %c0 = arith.constant 0 : index
    %c0_1 = arith.constant 0 : index
    %3 = vector.load %arg4[%c0, %c0_1] : memref<8x128xf32, #tpu.memory_space<vmem>>, vector<8x128xf32>
    %c0_2 = arith.constant 0 : index
    %c0_3 = arith.constant 0 : index
    %4 = vector.load %arg5[%c0_2, %c0_3] : memref<8x128xf32, #tpu.memory_space<vmem>>, vector<8x128xf32>
    %5 = math.log %3 : vector<8x128xf32>
    %cst = arith.constant -1.000000e+02 : f32
    %6 = vector.broadcast %cst : f32 to vector<8x128xf32>
    %7 = arith.maximumf %5, %6 : vector<8x128xf32>
    %cst_4 = arith.constant 1.000000e+00 : f32
    %8 = vector.broadcast %cst_4 : f32 to vector<8x128xf32>
    %9 = arith.subf %8, %3 : vector<8x128xf32>
    %10 = math.log %9 : vector<8x128xf32>
    %cst_5 = arith.constant -1.000000e+02 : f32
    %11 = vector.broadcast %cst_5 : f32 to vector<8x128xf32>
    %12 = arith.maximumf %10, %11 : vector<8x128xf32>
    %13 = arith.mulf %4, %7 : vector<8x128xf32>
    %cst_6 = arith.constant 1.000000e+00 : f32
    %14 = vector.broadcast %cst_6 : f32 to vector<8x128xf32>
    %15 = arith.subf %14, %4 : vector<8x128xf32>
    %16 = arith.mulf %15, %12 : vector<8x128xf32>
    %17 = arith.addf %13, %16 : vector<8x128xf32>
    %cst_7 = arith.constant 0.000000e+00 : f32
    %18 = vector.broadcast %cst_7 : f32 to vector<8x128xf32>
    %19 = arith.subf %18, %17 : vector<8x128xf32>
    %c1_i32 = arith.constant 1 : i32
    %20 = arith.muli %arg0, %c1_i32 : i32
    %21 = arith.addi %20, %arg1 : i32
    %c1024_i32 = arith.constant 1024 : i32
    %22 = arith.muli %21, %c1024_i32 : i32
    %23 = tpu.iota {dimensions = array<i32: 0>} : vector<8x128xi32>
    %24 = tpu.iota {dimensions = array<i32: 1>} : vector<8x128xi32>
    %c128_i32 = arith.constant 128 : i32
    %25 = vector.broadcast %c128_i32 : i32 to vector<8x128xi32>
    %26 = arith.muli %23, %25 : vector<8x128xi32>
    %27 = vector.broadcast %22 : i32 to vector<8x128xi32>
    %28 = arith.addi %27, %26 : vector<8x128xi32>
    %29 = arith.addi %28, %24 : vector<8x128xi32>
    %c0_8 = arith.constant 0 : index
    %30 = memref.load %arg2[%c0_8] : memref<1xi32, #tpu.memory_space<smem>>
    %31 = vector.broadcast %30 : i32 to vector<8x128xi32>
    %32 = arith.cmpi slt, %29, %31 : vector<8x128xi32>
    %cst_9 = arith.constant 0.000000e+00 : f32
    %33 = vector.broadcast %cst_9 : f32 to vector<8x128xf32>
    %34 = arith.select %32, %19, %33 : vector<8x128xi1>, vector<8x128xf32>
    %c0_10 = arith.constant 0 : index
    %c0_11 = arith.constant 0 : index
    %35 = vector.load %arg8[%c0_10, %c0_11] : memref<8x128xf32, #tpu.memory_space<vmem>>, vector<8x128xf32>
    %36 = arith.addf %35, %34 : vector<8x128xf32>
    %c0_12 = arith.constant 0 : index
    %c0_13 = arith.constant 0 : index
    %37 = vector.load %arg8[%c0_12, %c0_13] : memref<8x128xf32, #tpu.memory_space<vmem>>, vector<8x128xf32>
    tpu.vector_store %arg8[%c0_12, %c0_13], %36 {strides = array<i32>} : memref<8x128xf32, #tpu.memory_space<vmem>>, vector<8x128xf32>,
    %c0_i32_14 = arith.constant 0 : i32
    %38 = arith.cmpi eq, %arg1, %c0_i32_14 : i32
    %39 = arith.extui %38 : i1 to i32
    %c0_i32_15 = arith.constant 0 : i32
    %40 = arith.cmpi ne, %39, %c0_i32_15 : i32
    scf.if %40 {
      %c0_16 = arith.constant 0 : index
      %41 = memref.load %arg3[%c0_16] : memref<3xf32, #tpu.memory_space<smem>>
      %c1 = arith.constant 1 : index
      %42 = memref.load %arg3[%c1] : memref<3xf32, #tpu.memory_space<smem>>
      %43 = arith.mulf %42, %41 : f32
      %c0_17 = arith.constant 0 : index
      %c0_18 = arith.constant 0 : index
      %44 = vector.load %arg8[%c0_17, %c0_18] : memref<8x128xf32, #tpu.memory_space<vmem>>, vector<8x128xf32>
      %45 = vector.shape_cast %44 : vector<8x128xf32> to vector<1x8x128xf32>
      %cst_19 = arith.constant dense<0.000000e+00> : vector<1xf32>
      %46 = vector.multi_reduction <add>, %45, %cst_19 [1, 2] : vector<1x8x128xf32> to vector<1xf32>
      %47 = vector.shape_cast %46 : vector<1xf32> to vector<1x1x1xf32>
      %48 = vector.extract %47[0, 0, 0] : f32 from vector<1x1x1xf32>
      %49 = arith.mulf %43, %48 : f32
      %50 = vector.broadcast %49 : f32 to vector<8x128xf32>
      %c0_20 = arith.constant 0 : index
      %c0_21 = arith.constant 0 : index
      %51 = vector.load %arg7[%c0_20, %c0_21] : memref<8x128xf32, #tpu.memory_space<vmem>>, vector<8x128xf32>
      tpu.vector_store %arg7[%c0_20, %c0_21], %50 {strides = array<i32>} : memref<8x128xf32, #tpu.memory_space<vmem>>, vector<8x128xf32>,
      %c0_i32_22 = arith.constant 0 : i32
      %52 = arith.cmpi eq, %arg0, %c0_i32_22 : i32
      %53 = arith.extui %52 : i1 to i32
      %c0_i32_23 = arith.constant 0 : i32
      %54 = arith.cmpi ne, %53, %c0_i32_23 : i32
      scf.if %54 {
        %c2 = arith.constant 2 : index
        %55 = memref.load %arg3[%c2] : memref<3xf32, #tpu.memory_space<smem>>
        "tpu.region"() ({
          %67 = tpu.sem_alloc : memref<!tpu.dma_semaphore, #tpu.memory_space<semaphore_mem>>
          tpu.enqueue_dma source(%arg6 : memref<8x128xf32, #tpu.memory_space<any>>) target(%arg9 : memref<8x128xf32, #tpu.memory_space<vmem>>) target_semaphore(%67 : memref<!tpu.dma_semaphore, #tpu.memory_space<semaphore_mem>>)
          tpu.wait_dma2 semaphore(%67 : memref<!tpu.dma_semaphore, #tpu.memory_space<semaphore_mem>>) src(%arg6 : memref<8x128xf32, #tpu.memory_space<any>>) dst(%arg9 : memref<8x128xf32, #tpu.memory_space<vmem>>)
          tpu.yield
        }) : () -> ()
        %c0_24 = arith.constant 0 : index
        %c0_25 = arith.constant 0 : index
        %56 = vector.load %arg9[%c0_24, %c0_25] : memref<8x128xf32, #tpu.memory_space<vmem>>, vector<8x128xf32>
        %57 = math.absf %56 : vector<8x128xf32>
        %58 = vector.shape_cast %57 : vector<8x128xf32> to vector<1x8x128xf32>
        %cst_26 = arith.constant dense<0.000000e+00> : vector<1xf32>
        %59 = vector.multi_reduction <add>, %58, %cst_26 [1, 2] : vector<1x8x128xf32> to vector<1xf32>
        %60 = vector.shape_cast %59 : vector<1xf32> to vector<1x1x1xf32>
        %61 = vector.extract %60[0, 0, 0] : f32 from vector<1x1x1xf32>
        %c0_27 = arith.constant 0 : index
        %c0_28 = arith.constant 0 : index
        %62 = vector.load %arg7[%c0_27, %c0_28] : memref<8x128xf32, #tpu.memory_space<vmem>>, vector<8x128xf32>
        %63 = arith.mulf %55, %61 : f32
        %64 = vector.broadcast %63 : f32 to vector<8x128xf32>
        %65 = arith.addf %62, %64 : vector<8x128xf32>
        %c0_29 = arith.constant 0 : index
        %c0_30 = arith.constant 0 : index
        %66 = vector.load %arg7[%c0_29, %c0_30] : memref<8x128xf32, #tpu.memory_space<vmem>>, vector<8x128xf32>
        tpu.vector_store %arg7[%c0_29, %c0_30], %65 {strides = array<i32>} : memref<8x128xf32, #tpu.memory_space<vmem>>, vector<8x128xf32>,
      } else {
      }
    } else {
    }
    return
  }
  func.func @transform_0(%arg0: i32, %arg1: i32) -> i32 {
    %c0_i32 = arith.constant 0 : i32
    %c0_i32_0 = arith.constant 0 : i32
    return %c0_i32 : i32
  }
  func.func @transform_1(%arg0: i32, %arg1: i32) -> i32 {
    %c0_i32 = arith.constant 0 : i32
    %c0_i32_0 = arith.constant 0 : i32
    return %c0_i32 : i32
  }
  func.func @transform_2(%arg0: i32, %arg1: i32) -> (i32, i32) {
    %c1_i32 = arith.constant 1 : i32
    %0 = arith.muli %arg0, %c1_i32 : i32
    %1 = arith.addi %0, %arg1 : i32
    %c0_i32 = arith.constant 0 : i32
    %2 = arith.minsi %1, %c0_i32 : i32
    %c0_i32_0 = arith.constant 0 : i32
    %c0_i32_1 = arith.constant 0 : i32
    return %2, %c0_i32_0 : i32, i32
  }
  func.func @transform_3(%arg0: i32, %arg1: i32) -> (i32, i32) {
    %c1_i32 = arith.constant 1 : i32
    %0 = arith.muli %arg0, %c1_i32 : i32
    %1 = arith.addi %0, %arg1 : i32
    %c0_i32 = arith.constant 0 : i32
    %2 = arith.minsi %1, %c0_i32 : i32
    %c0_i32_0 = arith.constant 0 : i32
    %c0_i32_1 = arith.constant 0 : i32
    return %2, %c0_i32_0 : i32, i32
  }
  func.func @transform_5(%arg0: i32, %arg1: i32) -> (i32, i32) {
    %c0_i32 = arith.constant 0 : i32
    %c0_i32_0 = arith.constant 0 : i32
    return %arg0, %c0_i32 : i32, i32
  }
}

</mosaic_0001>

<llo_original>
// kernel: tpu_custom_call.1
$region0: #{tpu_custom_call.1}
  #allocation0 [shape = 'u32[]', space=smem, size = 0x4, offset = 0x4, fixed_abs, tag = 'smem constant byte address 0x4 - core index']
  #allocation1 [shape = 'u32[144,128]{1,0:T(1,128)}', space=vmem, size = 0x12000, scoped, tag = 'internal scratch']
  #allocation2 [shape = 'f32[8,128]{1,0:T(8,128)}', space=vmem, size = 0x1000, scoped, tag = 'scratch operand']
  #allocation3 [shape = 'f32[8,128]{1,0:T(8,128)}', space=vmem, size = 0x1000, scoped, tag = 'scratch operand']
  #allocation4 [shape = 's32[1]{0:T(128)S(6)}', space=smem, size = 0x200, scoped, tag = 'scoped memory for tpu_custom_call.1']
  #allocation14 [shape = 's32[]', space=sflag, size = 0x4, offset = 0, fixed_abs, tag = 'sflag constant byte address 0x0 - dummy sync flag']
  #allocation15 [shape = 's32[]', space=sflag, size = 0x4, offset = 0, fixed_abs, tag = 'sflag constant byte address 0x0 - dummy sync flag']
  #allocation16 [shape = 'u32[]', space=smem, size = 0x4, offset = 0x44, fixed_abs, tag = 'smem constant byte address 0x44 - assertion arg 0']
  #allocation17 [shape = 'u32[]', space=smem, size = 0x4, offset = 0x48, fixed_abs, tag = 'smem constant byte address 0x48 - assertion arg 1']
  %s0 = inlined_call_operand.<no memory space> [shape: s32[1], index: 0, kind: input, shape index: {}]
  %s1 = inlined_call_operand.vmem [shape: f32[3], index: 1, kind: input, shape index: {}]
  %s2 = inlined_call_operand.hbm [shape: f32[8,128], index: 2, kind: input, shape index: {}]
  %s3 = inlined_call_operand.hbm [shape: f32[8,128], index: 3, kind: input, shape index: {}]
  %s4 = inlined_call_operand.hbm [shape: f32[8,128], index: 4, kind: input, shape index: {}]
  %s5 = inlined_call_operand.hbm [shape: f32[16,128], index: 5, kind: output, shape index: {}]
  %s6 = sld [smem:[#allocation0]]
  $region78: #{tpu_custom_call.1} parent=0
    _
  %s8 = ssub.s32 1, %s6
  %s9 = scalar_select 0, %s8, %s6
  %10 = sst [smem:[#allocation4]] %s0
  $region1: #{tpu_custom_call.1} parent=0
    #allocation5 [shape = 'u8[512]{0}', space=smem, size = 0x200, scoped, tag = 'input window, operand 1, single buffered']
    #allocation6 [shape = 's32[2]{0}', space=sflag, size = 0x8, scoped, tag = 'scoped memory for tpu_custom_call.1']
    #allocation7 [shape = 's32[2]{0}', space=sflag, size = 0x8, scoped, tag = 'scoped memory for tpu_custom_call.1']
    #allocation8 [shape = 's32[2]{0}', space=sflag, size = 0x8, scoped, tag = 'scoped memory for tpu_custom_call.1']
    #allocation9 [shape = 'u8[8192]{0}', space=vmem, size = 0x2000, scoped, tag = 'input window, operand 2']
    #allocation10 [shape = 'u8[8192]{0}', space=vmem, size = 0x2000, scoped, tag = 'input window, operand 3']
    #allocation11 [shape = 's32[2]{0}', space=sflag, size = 0x8, scoped, tag = 'scoped memory for tpu_custom_call.1']
    #allocation12 [shape = 'u8[8192]{0}', space=vmem, size = 0x2000, scoped, tag = 'output window, operand 0']
    %11 = vsyncpa [#allocation8], 0
    %12 = vsyncpa [#allocation6], 0
    %s13 = scalar_lea.sflag [#allocation6], 1
    %14 = vsyncpa %s13, 0
    %15 = vsyncpa [#allocation11], 0
    %s16 = scalar_lea.sflag [#allocation11], 1
    %17 = vsyncpa %s16, 0
    %18 = vsyncpa [#allocation7], 0
    %s19 = scalar_lea.sflag [#allocation7], 1
    %20 = vsyncpa %s19, 0
    loop: start=0, step=1, limit=4
    $region2: #{tpu_custom_call.1} parent=1 // loop_pre_header
      _
    $region3: #{tpu_custom_call.1} parent=1 // loop_header
      %s22 = sphi 0, %s26
      %p23 = scmp.ge.s32.totalorder %s22, 4
      %s29 = sphi 0, %s41
      %s30 = sphi 0, %s37
      %s31 = sphi 0, %s29
      %s32 = sphi 0, %s30
      %s33 = sphi 0, %s31
      %s34 = sphi 0, %s32
      %s42 = sphi 0, %s42
      %s44 = sphi 0, %s42
      %s45 = sphi 0, %s44
      %s59 = sphi 0, %s45
      %s63 = sphi 0, %s63
      %s65 = sphi 0, %s63
      %s66 = sphi 0, %s65
      %s80 = sphi 0, %s66
      %s92 = sphi 0, %s94
      %s95 = sphi 0, %s92
      %s96 = sphi 0, %s95
      %s112 = sphi 0, %s96
      %s124 = sphi 0, %s126
      %s127 = sphi 0, %s124
      %s128 = sphi 0, %s127
      %s144 = sphi 0, %s128
      %s150 = sphi 0, %s152
      %s153 = sphi 0, %s150
      %s154 = sphi 0, %s153
      %s170 = sphi 0, %s154
    $region4: #{tpu_custom_call.1} parent=1 // loop_header_branch
      %25 = sbr.rel (%p23) target = $region8
    $region5: #{tpu_custom_call.1} parent=1 // loop_body
      %s27 = ssub.s32 %s22, 1
      %s28 = ssub.s32 %s22, 2
      %s35 = sadd.s32 1, %s30
      %p36 = scmp.ge.s32.totalorder %s35, 1
      %s37 = scalar_select %p36, 0, %s35
      %s38 = sadd.s32 1, %s29
      %s39 = scalar_select %p36, %s38, %s29
      %p40 = scmp.ge.s32.totalorder %s39, 2
      %s41 = scalar_select %p40, 0, %s39
      %s43 = sadd.s32 %s42, 1
      %p46 = scmp.eq.s32.totalorder %s22, 1
      %p47 = scmp.ne.s32.totalorder %s42, %s44
      %p48 = scmp.eq.s32.totalorder %s22, 0
      %p49 = por %p47, %p48
      %p50 = scmp.ne.s32.totalorder %s42, %s44
      %p51 = scmp.eq.s32.totalorder %s27, 1
      %p52 = por %p50, %p51
      %p53 = scmp.ne.s32.totalorder %s44, %s45
      %p54 = scmp.eq.s32.totalorder %s27, 0
      %p55 = por %p53, %p54
      %p56 = scmp.ne.s32.totalorder %s44, %s45
      %p57 = scmp.eq.s32.totalorder %s28, 1
      %p58 = por %p56, %p57
      %p60 = scmp.ne.s32.totalorder %s45, %s59
      %p61 = scmp.eq.s32.totalorder %s28, 0
      %p62 = por %p60, %p61
      %s64 = sadd.s32 %s63, 1
      %p67 = scmp.eq.s32.totalorder %s22, 1
      %p68 = scmp.ne.s32.totalorder %s63, %s65
      %p69 = scmp.eq.s32.totalorder %s22, 0
      %p70 = por %p68, %p69
      %p71 = scmp.ne.s32.totalorder %s63, %s65
      %p72 = scmp.eq.s32.totalorder %s27, 1
      %p73 = por %p71, %p72
      %p74 = scmp.ne.s32.totalorder %s65, %s66
      %p75 = scmp.eq.s32.totalorder %s27, 0
      %p76 = por %p74, %p75
      %p77 = scmp.ne.s32.totalorder %s65, %s66
      %p78 = scmp.eq.s32.totalorder %s28, 1
      %p79 = por %p77, %p78
      %p81 = scmp.ne.s32.totalorder %s66, %s80
      %p82 = scmp.eq.s32.totalorder %s28, 0
      %p83 = por %p81, %p82
      %s84 = sadd.s32 %s29, %s30
      %p85 = scmp.lt.s32.totalorder %s84, 0
      %s86 = scalar_select %p85, %s84, 0
      %s87 = sadd.s32 %s41, %s37
      %p88 = scmp.lt.s32.totalorder %s87, 0
      %s89 = scalar_select %p88, %s87, 0
      %s90 = ssub.s32 %s86, %s89
      %p91 = scmp.eq.s32.totalorder %s90, 0
      %s93 = sadd.s32 %s92, 1
      %s94 = scalar_select %p91, %s92, %s93
      %p97 = pneg %p91
      %p98 = scmp.eq.s32.totalorder %s22, 1
      %p99 = por %p97, %p98
      %p100 = scmp.ne.s32.totalorder %s92, %s95
      %p101 = scmp.eq.s32.totalorder %s22, 0
      %p102 = por %p100, %p101
      %p103 = scmp.ne.s32.totalorder %s92, %s95
      %p104 = scmp.eq.s32.totalorder %s27, 1
      %p105 = por %p103, %p104
      %p106 = scmp.ne.s32.totalorder %s95, %s96
      %p107 = scmp.eq.s32.totalorder %s27, 0
      %p108 = por %p106, %p107
      %p109 = scmp.ne.s32.totalorder %s95, %s96
      %p110 = scmp.eq.s32.totalorder %s28, 1
      %p111 = por %p109, %p110
      %p113 = scmp.ne.s32.totalorder %s96, %s112
      %p114 = scmp.eq.s32.totalorder %s28, 0
      %p115 = por %p113, %p114
      %s116 = sadd.s32 %s29, %s30
      %p117 = scmp.lt.s32.totalorder %s116, 0
      %s118 = scalar_select %p117, %s116, 0
      %s119 = sadd.s32 %s41, %s37
      %p120 = scmp.lt.s32.totalorder %s119, 0
      %s121 = scalar_select %p120, %s119, 0
      %s122 = ssub.s32 %s118, %s121
      %p123 = scmp.eq.s32.totalorder %s122, 0
      %s125 = sadd.s32 %s124, 1
      %s126 = scalar_select %p123, %s124, %s125
      %p129 = pneg %p123
      %p130 = scmp.eq.s32.totalorder %s22, 1
      %p131 = por %p129, %p130
      %p132 = scmp.ne.s32.totalorder %s124, %s127
      %p133 = scmp.eq.s32.totalorder %s22, 0
      %p134 = por %p132, %p133
      %p135 = scmp.ne.s32.totalorder %s124, %s127
      %p136 = scmp.eq.s32.totalorder %s27, 1
      %p137 = por %p135, %p136
      %p138 = scmp.ne.s32.totalorder %s127, %s128
      %p139 = scmp.eq.s32.totalorder %s27, 0
      %p140 = por %p138, %p139
      %p141 = scmp.ne.s32.totalorder %s127, %s128
      %p142 = scmp.eq.s32.totalorder %s28, 1
      %p143 = por %p141, %p142
      %p145 = scmp.ne.s32.totalorder %s128, %s144
      %p146 = scmp.eq.s32.totalorder %s28, 0
      %p147 = por %p145, %p146
      %s148 = ssub.s32 %s29, %s41
      %p149 = scmp.eq.s32.totalorder %s148, 0
      %s151 = sadd.s32 %s150, 1
      %s152 = scalar_select %p149, %s150, %s151
      %p155 = pneg %p149
      %p156 = scmp.eq.s32.totalorder %s22, 1
      %p157 = por %p155, %p156
      %p158 = scmp.ne.s32.totalorder %s150, %s153
      %p159 = scmp.eq.s32.totalorder %s22, 0
      %p160 = por %p158, %p159
      %p161 = scmp.ne.s32.totalorder %s150, %s153
      %p162 = scmp.eq.s32.totalorder %s27, 1
      %p163 = por %p161, %p162
      %p164 = scmp.ne.s32.totalorder %s153, %s154
      %p165 = scmp.eq.s32.totalorder %s27, 0
      %p166 = por %p164, %p165
      %p167 = scmp.ne.s32.totalorder %s153, %s154
      %p168 = scmp.eq.s32.totalorder %s28, 1
      %p169 = por %p167, %p168
      %p171 = scmp.ne.s32.totalorder %s154, %s170
      %p172 = scmp.eq.s32.totalorder %s28, 0
      %p173 = por %p171, %p172
      %p174 = scmp.le.s32.totalorder 1, %s22
      %p175 = scmp.lt.s32.totalorder %s22, 3
      %p176 = pnand %p174, %p175
      %p177 = pneg %p176
      // Predicated region
      $region9: #{tpu_custom_call.1} parent=5 // pred_check
        _
      $region10: #{tpu_custom_call.1} parent=5 // pred_check_branch
        %179 = sbr.rel (%p176) target = $region12
      $region11: #{tpu_custom_call.1} parent=5 // pred_region
        %s180 = ssub.s32 %s22, 1
        // Predicated region
        $region13: #{tpu_custom_call.1} parent=11 // pred_check
          %p181 = pneg %p55
        $region14: #{tpu_custom_call.1} parent=11 // pred_check_branch
          %183 = sbr.rel (%p181) target = $region16
        $region15: #{tpu_custom_call.1} parent=11 // pred_region
          _
        $region16: #{tpu_custom_call.1} parent=11 // pred_fallthru
          _
        // Predicated region
        $region17: #{tpu_custom_call.1} parent=11 // pred_check
          %p184 = pneg %p76
        $region18: #{tpu_custom_call.1} parent=11 // pred_check_branch
          %186 = sbr.rel (%p184) target = $region20
        $region19: #{tpu_custom_call.1} parent=11 // pred_region
          %s188 = ssub.s32 16, 16
          %189 = vsyncadd [#allocation8], %s188
          %s191 = sshll.u32 %s1, 4
          %s192 = int_to_ptr.vmem [resolvable:$true] %s191
          %194 = dma.vmem_to_smem %s192, 16, [#allocation5], [#allocation8]
        $region20: #{tpu_custom_call.1} parent=11 // pred_fallthru
          _
      $region12: #{tpu_custom_call.1} parent=5 // pred_fallthru
        _
      %p195 = scmp.lt.s32.totalorder %s22, 2
      // Predicated region
      $region21: #{tpu_custom_call.1} parent=5 // pred_check
        %p196 = pneg %p195
      $region22: #{tpu_custom_call.1} parent=5 // pred_check_branch
        %198 = sbr.rel (%p196) target = $region24
      $region23: #{tpu_custom_call.1} parent=5 // pred_region
        // Predicated region
        $region25: #{tpu_custom_call.1} parent=23 // pred_check
          %p199 = pneg %p102
        $region26: #{tpu_custom_call.1} parent=23 // pred_check_branch
          %201 = sbr.rel (%p199) target = $region28
        $region27: #{tpu_custom_call.1} parent=23 // pred_region
          %s202 = sand.u32 %s92, 1
          %s203 = scalar_lea.sflag [#allocation6], %s202
          %s204 = sand.u32 %s92, 1
          %s205 = smul.addr %s204, 8
          %s206 = scalar_lea.vmem [#allocation9], %s205
          %s207 = sadd.s32 %s29, %s30
          %p208 = scmp.lt.s32.totalorder %s207, 0
          %s209 = scalar_select %p208, %s207, 0
          %s211 = ssub.s32 128, 128
          %212 = vsyncadd %s203, %s211
          %s213 = smul.addr %s209, 128
          %s214 = scalar_lea.hbm %s2, %s213
          %s216 = sshll.u32 %s206, 4
          %s217 = int_to_ptr.vmem [resolvable:$true] %s216
          %219 = dma.hbm_to_vmem [thread:$0]  %s214, 128, %s217, %s203
        $region28: #{tpu_custom_call.1} parent=23 // pred_fallthru
          _
        // Predicated region
        $region29: #{tpu_custom_call.1} parent=23 // pred_check
          %p220 = pneg %p134
        $region30: #{tpu_custom_call.1} parent=23 // pred_check_branch
          %222 = sbr.rel (%p220) target = $region32
        $region31: #{tpu_custom_call.1} parent=23 // pred_region
          %s223 = sand.u32 %s124, 1
          %s224 = scalar_lea.sflag [#allocation11], %s223
          %s225 = sand.u32 %s124, 1
          %s226 = smul.addr %s225, 8
          %s227 = scalar_lea.vmem [#allocation10], %s226
          %s228 = sadd.s32 %s29, %s30
          %p229 = scmp.lt.s32.totalorder %s228, 0
          %s230 = scalar_select %p229, %s228, 0
          %s232 = ssub.s32 128, 128
          %233 = vsyncadd %s224, %s232
          %s234 = smul.addr %s230, 128
          %s235 = scalar_lea.hbm %s3, %s234
          %s237 = sshll.u32 %s227, 4
          %s238 = int_to_ptr.vmem [resolvable:$true] %s237
          %240 = dma.hbm_to_vmem [thread:$0]  %s235, 128, %s238, %s224
        $region32: #{tpu_custom_call.1} parent=23 // pred_fallthru
          _
      $region24: #{tpu_custom_call.1} parent=5 // pred_fallthru
        _
      %p241 = scmp.le.s32.totalorder 1, %s22
      %p242 = scmp.lt.s32.totalorder %s22, 3
      %p243 = pnand %p241, %p242
      %p244 = pneg %p243
      // Predicated region
      $region33: #{tpu_custom_call.1} parent=5 // pred_check
        _
      $region34: #{tpu_custom_call.1} parent=5 // pred_check_branch
        %246 = sbr.rel (%p243) target = $region36
      $region35: #{tpu_custom_call.1} parent=5 // pred_region
        %s247 = ssub.s32 %s22, 1
        // Predicated region
        $region37: #{tpu_custom_call.1} parent=35 // pred_check
          %p248 = pneg %p76
        $region38: #{tpu_custom_call.1} parent=35 // pred_check_branch
          %250 = sbr.rel (%p248) target = $region40
        $region39: #{tpu_custom_call.1} parent=35 // pred_region
          %251 = dma.done [#allocation8], 16
        $region40: #{tpu_custom_call.1} parent=35 // pred_fallthru
          _
        %s252 = sand.u32 %s95, 1
        %s253 = scalar_lea.sflag [#allocation6], %s252
        %s254 = sand.u32 %s95, 1
        %s255 = smul.addr %s254, 8
        %s256 = scalar_lea.vmem [#allocation9], %s255
        // Predicated region
        $region41: #{tpu_custom_call.1} parent=35 // pred_check
          %p257 = pneg %p108
        $region42: #{tpu_custom_call.1} parent=35 // pred_check_branch
          %259 = sbr.rel (%p257) target = $region44
        $region43: #{tpu_custom_call.1} parent=35 // pred_region
          %260 = dma.done %s253, 128
        $region44: #{tpu_custom_call.1} parent=35 // pred_fallthru
          _
        %s261 = sand.u32 %s127, 1
        %s262 = scalar_lea.sflag [#allocation11], %s261
        %s263 = sand.u32 %s127, 1
        %s264 = smul.addr %s263, 8
        %s265 = scalar_lea.vmem [#allocation10], %s264
        // Predicated region
        $region45: #{tpu_custom_call.1} parent=35 // pred_check
          %p266 = pneg %p140
        $region46: #{tpu_custom_call.1} parent=35 // pred_check_branch
          %268 = sbr.rel (%p266) target = $region48
        $region47: #{tpu_custom_call.1} parent=35 // pred_region
          %269 = dma.done %s262, 128
        $region48: #{tpu_custom_call.1} parent=35 // pred_fallthru
          _
        %270 = sfence
        %p271 = pneg %p55
        %p272 = pneg %p52
        %p273 = pneg %p76
        %p274 = pneg %p73
        %s275 = sand.u32 %s95, 1
        %s276 = scalar_lea.sflag [#allocation6], %s275
        %s277 = sand.u32 %s95, 1
        %s278 = smul.addr %s277, 8
        %s279 = scalar_lea.vmem [#allocation9], %s278
        %p280 = pneg %p108
        %p281 = pneg %p105
        %s282 = sand.u32 %s127, 1
        %s283 = scalar_lea.sflag [#allocation11], %s282
        %s284 = sand.u32 %s127, 1
        %s285 = smul.addr %s284, 8
        %s286 = scalar_lea.vmem [#allocation10], %s285
        %p287 = pneg %p140
        %p288 = pneg %p137
        %p289 = pneg %p166
        %p290 = pneg %p163
        %s291 = sand.u32 %s153, 1
        %s292 = scalar_lea.sflag [#allocation7], %s291
        %s293 = sand.u32 %s153, 1
        %s294 = smul.addr %s293, 8
        %s295 = scalar_lea.vmem [#allocation12], %s294
        %s296 = sadd.s32 %s31, %s32
        %p297 = scmp.lt.s32.totalorder %s296, 0
        %s298 = scalar_select %p297, %s296, 0
        %s299 = sadd.s32 %s31, %s32
        %p300 = scmp.lt.s32.totalorder %s299, 0
        %s301 = scalar_select %p300, %s299, 0
        %p302 = scmp.eq.s32.totalorder %s32, 0
        // Predicated region
        $region49: #{tpu_custom_call.1} parent=35 // pred_check
          %p303 = pneg %p302
        $region50: #{tpu_custom_call.1} parent=35 // pred_check_branch
          %305 = sbr.rel (%p303) target = $region52
        $region51: #{tpu_custom_call.1} parent=35 // pred_region
          %306 = vst [vmem:[#allocation2] sm:$0xff] 0.0
        $region52: #{tpu_custom_call.1} parent=35 // pred_fallthru
          _
        %v307 = vld [vmem:[%s256] sm:$0xff]
        %v308 = vld [vmem:[%s265] sm:$0xff]
        %v309 = vlog2.pop %v307
        %v310 = vmul.f32 %v309, 0.6931472
        %v311 = vmax.f32 %v310, -100.0
        %v312 = vsub.f32 1.0, %v307
        %v313 = vlog2.pop %v312
        %v314 = vmul.f32 %v313, 0.6931472
        %v315 = vmax.f32 %v314, -100.0
        %v316 = vmul.f32 %v308, %v311
        %v317 = vsub.f32 1.0, %v308
        %v318 = vmul.f32 %v317, %v315
        %v319 = vadd.f32 %v316, %v318
        %v320 = vsub.f32 0.0, %v319
        %s321 = sadd.s32 %s31, %s32
        %s322 = smul.u32 %s321, 1024
        %v323 = vlaneseq
        %v324 = vshrl.u32 %v323, 7
        %v325 = vlaneseq
        %v326 = vand.u32 %v325, 127
        %v327 = vmul.u32 %v324, 128
        %v328 = vstv %s322
        %v329 = vadd.s32 %v328, %v327
        %v330 = vadd.s32 %v329, %v326
        %s331 = sld [smem:[#allocation4]]
        %v332 = vstv %s331
        %vm333 = vcmp.lt.s32.totalorder %v330, %v332
        %v334 = vsel %vm333, %v320, 0.0
        %v335 = vld [vmem:[#allocation2] sm:$0xff]
        %v336 = vadd.f32 %v335, %v334
        %337 = vst [vmem:[#allocation2] sm:$0xff] %v336
        // Predicated region
        $region53: #{tpu_custom_call.1} parent=35 // pred_check
          %p338 = pneg %p302
        $region54: #{tpu_custom_call.1} parent=35 // pred_check_branch
          %340 = sbr.rel (%p338) target = $region56
        $region55: #{tpu_custom_call.1} parent=35 // pred_region
          %s341 = sld [smem:[#allocation5]]
          %s342 = sld [smem:[#allocation5 + $0x1]]
          %s343 = smul.f32 %s342, %s341
          %v344 = vld [vmem:[#allocation2] sm:$0xff]
          %345 = vadd.xlane.f32.xlu0 %v344
          %v346 = vpop.xlane.xlu0 %345
          %v347 = vrot.slane %v346, 4
          %v348 = vadd.f32 %v346, %v347
          %v349 = vrot.slane %v348, 2
          %v350 = vadd.f32 %v348, %v349
          %v351 = vrot.slane %v350, 1
          %v352 = vadd.f32 %v350, %v351
          %s353 = vtos %v352
          %s354 = smul.f32 %s343, %s353
          %v355 = vstv %s354
          %356 = vst [vmem:[%s295] sm:$0xff] %v355
          %p357 = scmp.eq.s32.totalorder %s31, 0
          // Predicated region
          $region57: #{tpu_custom_call.1} parent=55 // pred_check
            %p358 = pneg %p357
          $region58: #{tpu_custom_call.1} parent=55 // pred_check_branch
            %360 = sbr.rel (%p358) target = $region60
          $region59: #{tpu_custom_call.1} parent=55 // pred_region
            %s361 = sld [smem:[#allocation5 + $0x2]]
            $region61: #{tpu_custom_call.1} parent=59
              #allocation13 [shape = 's32[1]{0}', space=sflag, size = 0x4, scoped, tag = 'scoped memory for tpu_custom_call.1']
              // Predicated region
              $region62: #{tpu_custom_call.1} parent=61 // pred_check
                _
              $region63: #{tpu_custom_call.1} parent=61 // pred_check_branch
                %363 = sbr.rel target = $region65
              $region64: #{tpu_custom_call.1} parent=61 // pred_region
                %364 = sst [smem:[#allocation16]] [#allocation15]
                %365 = sst [smem:[#allocation17]] [#allocation14]
              $region65: #{tpu_custom_call.1} parent=61 // pred_fallthru
                _
              %367 = shalt.err (0)
              %s369 = sshll.u32 [#allocation3], 4
              %s370 = int_to_ptr.vmem [resolvable:$true] %s369
              %372 = dma.hbm_to_vmem [thread:$0]  %s4, 128, %s370, [#allocation13]
              %s373 = smul.u32 8, 1
              %s374 = sshll.u32 %s373, 4
              %375 = dma.done [#allocation13], %s374
            %v376 = vld [vmem:[#allocation3] sm:$0xff]
            %v377 = vand.u32 2147483647, %v376
            %378 = vadd.xlane.f32.xlu0 %v377
            %v379 = vpop.xlane.xlu0 %378
            %v380 = vrot.slane %v379, 4
            %v381 = vadd.f32 %v379, %v380
            %v382 = vrot.slane %v381, 2
            %v383 = vadd.f32 %v381, %v382
            %v384 = vrot.slane %v383, 1
            %v385 = vadd.f32 %v383, %v384
            %s386 = vtos %v385
            %v387 = vld [vmem:[%s295] sm:$0xff]
            %s388 = smul.f32 %s361, %s386
            %v389 = vstv %s388
            %v390 = vadd.f32 %v387, %v389
            %391 = vst [vmem:[%s295] sm:$0xff] %v390
          $region60: #{tpu_custom_call.1} parent=55 // pred_fallthru
            _
        $region56: #{tpu_custom_call.1} parent=35 // pred_fallthru
          _
        %s392 = sand.u32 %s153, 1
        %s393 = scalar_lea.sflag [#allocation7], %s392
        %s394 = sand.u32 %s153, 1
        %s395 = smul.addr %s394, 8
        %s396 = scalar_lea.vmem [#allocation12], %s395
        // Predicated region
        $region66: #{tpu_custom_call.1} parent=35 // pred_check
          %p397 = pneg %p163
        $region67: #{tpu_custom_call.1} parent=35 // pred_check_branch
          %399 = sbr.rel (%p397) target = $region69
        $region68: #{tpu_custom_call.1} parent=35 // pred_region
          %s401 = ssub.s32 128, 128
          %402 = vsyncadd %s393, %s401
          %s403 = smul.addr %s31, 128
          %s404 = scalar_lea.hbm %s5, %s403
          %s406 = sshll.u32 %s396, 4
          %s407 = int_to_ptr.vmem [resolvable:$true] %s406
          %409 = dma.vmem_to_hbm [thread:$0]  %s407, 128, %s404, %s393
        $region69: #{tpu_custom_call.1} parent=35 // pred_fallthru
          _
      $region36: #{tpu_custom_call.1} parent=5 // pred_fallthru
        _
      %p410 = scmp.le.s32.totalorder 2, %s22
      // Predicated region
      $region70: #{tpu_custom_call.1} parent=5 // pred_check
        %p411 = pneg %p410
      $region71: #{tpu_custom_call.1} parent=5 // pred_check_branch
        %413 = sbr.rel (%p411) target = $region73
      $region72: #{tpu_custom_call.1} parent=5 // pred_region
        %s414 = ssub.s32 %s22, 2
        // Predicated region
        $region74: #{tpu_custom_call.1} parent=72 // pred_check
          %p415 = pneg %p169
        $region75: #{tpu_custom_call.1} parent=72 // pred_check_branch
          %417 = sbr.rel (%p415) target = $region77
        $region76: #{tpu_custom_call.1} parent=72 // pred_region
          %s418 = sand.u32 %s154, 1
          %s419 = scalar_lea.sflag [#allocation7], %s418
          %s420 = sand.u32 %s154, 1
          %s421 = smul.addr %s420, 8
          %s422 = scalar_lea.vmem [#allocation12], %s421
          %423 = dma.done %s419, 128
        $region77: #{tpu_custom_call.1} parent=72 // pred_fallthru
          _
      $region73: #{tpu_custom_call.1} parent=5 // pred_fallthru
        _
    $region6: #{tpu_custom_call.1} parent=1 // loop_footer
      %s26 = sadd.s32 1, %s22
    $region7: #{tpu_custom_call.1} parent=1 // loop_footer_branch
      %21 = sbr.rel target = $region3
    $region8: #{tpu_custom_call.1} parent=1 // loop_exit
      _
    %424 = vsyncpa [#allocation6], 1
    %s425 = scalar_lea.sflag [#allocation6], 1
    %426 = vsyncpa %s425, 1
    %427 = vsyncpa [#allocation11], 1
    %s428 = scalar_lea.sflag [#allocation11], 1
    %429 = vsyncpa %s428, 1
    %430 = vsyncpa [#allocation7], 1
    %s431 = scalar_lea.sflag [#allocation7], 1
    %432 = vsyncpa %s431, 1
    %433 = vsyncpa [#allocation8], 1
    %s434 = scalar_lea.sflag [#allocation8], 1
    %435 = vsyncpa %s434, 1

</llo_original>
